<compile_context>
chip_gen: v5e
topology: v5e:2x2
jax: 0.10.0
libtpu: 0.0.40
codegen_flags: <defaults>
</compile_context>

<pallas_src>
import functools
import re

import jax
import jax.numpy as jnp
from jax.experimental import pallas as pl
from jax.experimental.pallas import tpu as pltpu


def twin_regressor_kernel(x1_ref, x2_ref,
                          w1_ref, b1_ref,
                          w2_ref, b2_ref,
                          wg_ref, bg_ref,
                          o_ref, *, vpu_head, ew_dtype):
    """Fused shared-encoder twin pass + difference head for one batch tile."""
    mm_dtype = w1_ref.dtype          # bf16 MXU operands

    def encode(x_ref):
        # Cast the streamed f32 tile to bf16 on the VPU (cheap), f32 MXU acc.
        x = x_ref[...].astype(mm_dtype)
        z = jnp.dot(x, w1_ref[...], preferred_element_type=jnp.float32)
        a = jnp.maximum(z.astype(ew_dtype) + b1_ref[...], 0).astype(mm_dtype)
        z = jnp.dot(a, w2_ref[...], preferred_element_type=jnp.float32)
        return jnp.maximum(z.astype(ew_dtype) + b2_ref[...], 0)

    # Two encoder passes share the resident weights; subtract directly
    # (no concat / slice VMEM copies).
    d = encode(x1_ref) - encode(x2_ref)                   # (tb, rep)

    if vpu_head:
        # out_dim == 1: wg arrives transposed as (1, rep) in f32.
        # Broadcast-multiply (promotes to f32) + lane reduction; skip the MXU.
        o = jnp.sum(d * wg_ref[...], axis=-1, keepdims=True) + bg_ref[...]
    else:
        # General head: (tb, rep) @ (rep, out_dim) on the MXU.
        o = (jnp.dot(d.astype(wg_ref.dtype), wg_ref[...],
                     preferred_element_type=jnp.float32) + bg_ref[...])

    # TODO(synk): lane-dense (1, tb) store for out_dim==1 (avoids tb/8 masked
    # vst.msk) skipped — it needs a sublane->lane transpose of the (tb, 1)
    # result whose Mosaic lowering is shape-restricted.
    o_ref[...] = o.astype(o_ref.dtype)


def _round_up(x, m):
    return ((x + m - 1) // m) * m


def _tpu_generation():
    """Best-effort TPU generation from device_kind (0 if unknown)."""
    try:
        kind = str(jax.devices()[0].device_kind)
    except Exception:
        return 0
    m = re.search(r"(\d+)", kind)
    return int(m.group(1)) if m else 0


def twin_regressor(x1, x2, params, *, batch_tile=None):
    """Fused Pallas TwinRegressor forward.

    x1, x2 : (B, in_dim) float32
    params : dict with w1 (in_dim,128), b1 (1,128), w2 (128,rep_dim),
             b2 (1,rep_dim), wg (rep_dim,out_dim), bg (1,out_dim), all f32.
    """
    B, in_dim = x1.shape
    hid = params["w1"].shape[1]
    rep = params["w2"].shape[1]
    out_dim = params["wg"].shape[1]

    gen = _tpu_generation()
    ew_dtype = jnp.bfloat16 if gen >= 6 else jnp.float32   # bf16 VPU on v6e/v7x
    min_steps = 2 if gen >= 7 else 1                        # v7x: 2 TCs / chip
    cap = 4096 if gen in (5, 6) else 2048                   # v7x: half the VMEM

    # ---- batch tile: big tiles amortize the ~0.35us/step grid overhead;
    #      collapse to one step on single-TC chips when the batch fits.
    if batch_tile is not None:
        tb = min(int(batch_tile), B)
        if tb < B:
            tb = max(8, (tb // 8) * 8)          # sublane-aligned partial tile
    elif B <= 8 or (min_steps == 1 and B <= cap):
        tb = B                                   # one full block
    else:
        steps = max(min_steps, pl.cdiv(B, cap))
        tb = min(B, max(8, _round_up(pl.cdiv(B, steps), 8)))

    grid = (pl.cdiv(B, tb),)                     # no input padding: trailing
                                                 # partial block is masked.

    # ---- dtype plan: bf16 MXU operands (cast in-kernel), f32 accumulation,
    #      elementwise chain in ew_dtype, head bias/output f32.
    w1 = params["w1"].astype(jnp.bfloat16)
    w2 = params["w2"].astype(jnp.bfloat16)
    b1 = jnp.reshape(params["b1"], (1, hid)).astype(ew_dtype)
    b2 = jnp.reshape(params["b2"], (1, rep)).astype(ew_dtype)
    bg = jnp.reshape(params["bg"], (1, out_dim)).astype(jnp.float32)

    vpu_head = (out_dim == 1)
    if vpu_head:
        wg = params["wg"].T.astype(jnp.float32)      # (1, rep), VPU path
        wg_shape = (out_dim, rep)
    else:
        wg = params["wg"].astype(jnp.bfloat16)       # (rep, out_dim), MXU path
        wg_shape = (rep, out_dim)

    def batch_map(i):
        return (i, 0)

    def const_map(i):
        return (0, 0)

    kernel = functools.partial(twin_regressor_kernel,
                               vpu_head=vpu_head, ew_dtype=ew_dtype)

    out = pl.pallas_call(
        kernel,
        out_shape=jax.ShapeDtypeStruct((B, out_dim), jnp.float32),
        grid_spec=pl.GridSpec(
            grid=grid,
            in_specs=[
                pl.BlockSpec((tb, in_dim), batch_map),      # x1 (streamed, f32)
                pl.BlockSpec((tb, in_dim), batch_map),      # x2 (streamed, f32)
                pl.BlockSpec((in_dim, hid), const_map),     # w1 (resident)
                pl.BlockSpec((1, hid), const_map),          # b1
                pl.BlockSpec((hid, rep), const_map),        # w2
                pl.BlockSpec((1, rep), const_map),          # b2
                pl.BlockSpec(wg_shape, const_map),          # wg
                pl.BlockSpec((1, out_dim), const_map),      # bg
            ],
            out_specs=pl.BlockSpec((tb, out_dim), batch_map),
        ),
        compiler_params=pltpu.CompilerParams(
            dimension_semantics=("parallel",),
            vmem_limit_bytes=32 * 1024 * 1024,
        ),
    )(x1, x2, w1, b1, w2, b2, wg, bg)

    return out


def reference(x1, x2, p):
    """Pure-f32 reference matching the PyTorch module."""
    def enc(x):
        z = jnp.maximum(x @ p["w1"] + p["b1"], 0.0)
        return jnp.maximum(z @ p["w2"] + p["b2"], 0.0)
    return (enc(x1) - enc(x2)) @ p["wg"] + p["bg"]


if __name__ == "__main__":
    # Small shapes consistent with the module's forward.
    B, in_dim, hid, rep_dim, out_dim = 256, 32, 128, 64, 1

    key = jax.random.PRNGKey(0)
    k = jax.random.split(key, 8)

    # Deterministic synthetic parameters (PyTorch Linear default-ish scale).
    params = {
        "w1": jax.random.uniform(k[0], (in_dim, hid), jnp.float32,
                                 -1.0 / jnp.sqrt(in_dim), 1.0 / jnp.sqrt(in_dim)),
        "b1": jax.random.uniform(k[1], (1, hid), jnp.float32,
                                 -1.0 / jnp.sqrt(in_dim), 1.0 / jnp.sqrt(in_dim)),
        "w2": jax.random.uniform(k[2], (hid, rep_dim), jnp.float32,
                                 -1.0 / jnp.sqrt(hid), 1.0 / jnp.sqrt(hid)),
        "b2": jax.random.uniform(k[3], (1, rep_dim), jnp.float32,
                                 -1.0 / jnp.sqrt(hid), 1.0 / jnp.sqrt(hid)),
        "wg": jax.random.uniform(k[4], (rep_dim, out_dim), jnp.float32,
                                 -1.0 / jnp.sqrt(rep_dim), 1.0 / jnp.sqrt(rep_dim)),
        "bg": jax.random.uniform(k[5], (1, out_dim), jnp.float32,
                                 -1.0 / jnp.sqrt(rep_dim), 1.0 / jnp.sqrt(rep_dim)),
    }

    x1 = jax.random.normal(k[6], (B, in_dim), jnp.float32)
    x2 = jax.random.normal(k[7], (B, in_dim), jnp.float32)

    ref = reference(x1, x2, params)

    # Default tiling: one grid step on single-TC chips, two on v7x.
    out = jax.block_until_ready(twin_regressor(x1, x2, params))
    assert out.shape == (B, out_dim)
    # bf16 MXU operands (+ bf16 elementwise chain on v6e/v7x) vs. pure-f32
    # reference -> loosened tolerance.
    assert jnp.allclose(out, ref, atol=5e-2, rtol=5e-2), (
        float(jnp.max(jnp.abs(out - ref))))

    # Forced small tile: multi-step grid with a masked partial trailing block.
    out2 = jax.block_until_ready(twin_regressor(x1, x2, params, batch_tile=96))
    assert out2.shape == (B, out_dim)
    assert jnp.allclose(out2, ref, atol=5e-2, rtol=5e-2), (
        float(jnp.max(jnp.abs(out2 - ref))))

    print("KERNEL_OK")
</pallas_src>

<mosaic_0001>
module attributes {stable_mosaic.version = 11 : i64} {
  func.func @twin_regressor_kernel(%arg0: i32, %arg1: memref<256x32xf32, #tpu.memory_space<vmem>>, %arg2: memref<256x32xf32, #tpu.memory_space<vmem>>, %arg3: memref<32x128xbf16, #tpu.memory_space<vmem>>, %arg4: memref<1x128xf32, #tpu.memory_space<vmem>>, %arg5: memref<128x64xbf16, #tpu.memory_space<vmem>>, %arg6: memref<1x64xf32, #tpu.memory_space<vmem>>, %arg7: memref<1x64xf32, #tpu.memory_space<vmem>>, %arg8: memref<1x1xf32, #tpu.memory_space<vmem>>, %arg9: memref<256x1xf32, #tpu.memory_space<vmem>>) attributes {dimension_semantics = [#tpu.dimension_semantics<parallel>], iteration_bounds = array<i64: 1>, scalar_prefetch = 0 : i64, scratch_operands = 0 : i64, tpu.core_type = #tpu.core_type<tc>, window_params = [{transform_indices = @transform_0, window_bounds = array<i64: 256, 32>}, {transform_indices = @transform_1, window_bounds = array<i64: 256, 32>}, {pipeline_mode = #tpu.pipeline_mode<synchronous>, transform_indices = @transform_2, window_bounds = array<i64: 32, 128>}, {pipeline_mode = #tpu.pipeline_mode<synchronous>, transform_indices = @transform_3, window_bounds = array<i64: 1, 128>}, {pipeline_mode = #tpu.pipeline_mode<synchronous>, transform_indices = @transform_4, window_bounds = array<i64: 128, 64>}, {pipeline_mode = #tpu.pipeline_mode<synchronous>, transform_indices = @transform_5, window_bounds = array<i64: 1, 64>}, {pipeline_mode = #tpu.pipeline_mode<synchronous>, transform_indices = @transform_6, window_bounds = array<i64: 1, 64>}, {pipeline_mode = #tpu.pipeline_mode<synchronous>, transform_indices = @transform_7, window_bounds = array<i64: 1, 1>}, {transform_indices = @transform_8, window_bounds = array<i64: 256, 1>}]} {
    %c0 = arith.constant 0 : index
    %c0_0 = arith.constant 0 : index
    %0 = vector.load %arg1[%c0, %c0_0] : memref<256x32xf32, #tpu.memory_space<vmem>>, vector<256x32xf32>
    %1 = arith.truncf %0 : vector<256x32xf32> to vector<256x32xbf16>
    %c0_1 = arith.constant 0 : index
    %c0_2 = arith.constant 0 : index
    %2 = vector.load %arg3[%c0_1, %c0_2] : memref<32x128xbf16, #tpu.memory_space<vmem>>, vector<32x128xbf16>
    %cst = arith.constant dense<0.000000e+00> : vector<256x128xf32>
    %3 = tpu.matmul %1, %2, %cst {dimension_numbers = #tpu.dot_dimension_numbers<[1], [0], [0], [1], [0, 0, 1, 1], [], []>} : vector<256x32xbf16>, vector<32x128xbf16>, vector<256x128xf32> -> vector<256x128xf32>
    %c0_3 = arith.constant 0 : index
    %c0_4 = arith.constant 0 : index
    %4 = vector.load %arg4[%c0_3, %c0_4] : memref<1x128xf32, #tpu.memory_space<vmem>>, vector<1x128xf32>
    %5 = vector.broadcast %4 : vector<1x128xf32> to vector<256x128xf32>
    %6 = arith.addf %3, %5 : vector<256x128xf32>
    %cst_5 = arith.constant 0.000000e+00 : f32
    %7 = vector.broadcast %cst_5 : f32 to vector<256x128xf32>
    %8 = arith.maximumf %6, %7 : vector<256x128xf32>
    %9 = arith.truncf %8 : vector<256x128xf32> to vector<256x128xbf16>
    %c0_6 = arith.constant 0 : index
    %c0_7 = arith.constant 0 : index
    %10 = vector.load %arg5[%c0_6, %c0_7] : memref<128x64xbf16, #tpu.memory_space<vmem>>, vector<128x64xbf16>
    %cst_8 = arith.constant dense<0.000000e+00> : vector<256x64xf32>
    %11 = tpu.matmul %9, %10, %cst_8 {dimension_numbers = #tpu.dot_dimension_numbers<[1], [0], [0], [1], [0, 0, 1, 1], [], []>} : vector<256x128xbf16>, vector<128x64xbf16>, vector<256x64xf32> -> vector<256x64xf32>
    %c0_9 = arith.constant 0 : index
    %c0_10 = arith.constant 0 : index
    %12 = vector.load %arg6[%c0_9, %c0_10] : memref<1x64xf32, #tpu.memory_space<vmem>>, vector<1x64xf32>
    %13 = vector.broadcast %12 : vector<1x64xf32> to vector<256x64xf32>
    %14 = arith.addf %11, %13 : vector<256x64xf32>
    %cst_11 = arith.constant 0.000000e+00 : f32
    %15 = vector.broadcast %cst_11 : f32 to vector<256x64xf32>
    %16 = arith.maximumf %14, %15 : vector<256x64xf32>
    %c0_12 = arith.constant 0 : index
    %c0_13 = arith.constant 0 : index
    %17 = vector.load %arg2[%c0_12, %c0_13] : memref<256x32xf32, #tpu.memory_space<vmem>>, vector<256x32xf32>
    %18 = arith.truncf %17 : vector<256x32xf32> to vector<256x32xbf16>
    %c0_14 = arith.constant 0 : index
    %c0_15 = arith.constant 0 : index
    %19 = vector.load %arg3[%c0_14, %c0_15] : memref<32x128xbf16, #tpu.memory_space<vmem>>, vector<32x128xbf16>
    %cst_16 = arith.constant dense<0.000000e+00> : vector<256x128xf32>
    %20 = tpu.matmul %18, %19, %cst_16 {dimension_numbers = #tpu.dot_dimension_numbers<[1], [0], [0], [1], [0, 0, 1, 1], [], []>} : vector<256x32xbf16>, vector<32x128xbf16>, vector<256x128xf32> -> vector<256x128xf32>
    %c0_17 = arith.constant 0 : index
    %c0_18 = arith.constant 0 : index
    %21 = vector.load %arg4[%c0_17, %c0_18] : memref<1x128xf32, #tpu.memory_space<vmem>>, vector<1x128xf32>
    %22 = vector.broadcast %21 : vector<1x128xf32> to vector<256x128xf32>
    %23 = arith.addf %20, %22 : vector<256x128xf32>
    %cst_19 = arith.constant 0.000000e+00 : f32
    %24 = vector.broadcast %cst_19 : f32 to vector<256x128xf32>
    %25 = arith.maximumf %23, %24 : vector<256x128xf32>
    %26 = arith.truncf %25 : vector<256x128xf32> to vector<256x128xbf16>
    %c0_20 = arith.constant 0 : index
    %c0_21 = arith.constant 0 : index
    %27 = vector.load %arg5[%c0_20, %c0_21] : memref<128x64xbf16, #tpu.memory_space<vmem>>, vector<128x64xbf16>
    %cst_22 = arith.constant dense<0.000000e+00> : vector<256x64xf32>
    %28 = tpu.matmul %26, %27, %cst_22 {dimension_numbers = #tpu.dot_dimension_numbers<[1], [0], [0], [1], [0, 0, 1, 1], [], []>} : vector<256x128xbf16>, vector<128x64xbf16>, vector<256x64xf32> -> vector<256x64xf32>
    %c0_23 = arith.constant 0 : index
    %c0_24 = arith.constant 0 : index
    %29 = vector.load %arg6[%c0_23, %c0_24] : memref<1x64xf32, #tpu.memory_space<vmem>>, vector<1x64xf32>
    %30 = vector.broadcast %29 : vector<1x64xf32> to vector<256x64xf32>
    %31 = arith.addf %28, %30 : vector<256x64xf32>
    %cst_25 = arith.constant 0.000000e+00 : f32
    %32 = vector.broadcast %cst_25 : f32 to vector<256x64xf32>
    %33 = arith.maximumf %31, %32 : vector<256x64xf32>
    %34 = arith.subf %16, %33 : vector<256x64xf32>
    %c0_26 = arith.constant 0 : index
    %c0_27 = arith.constant 0 : index
    %35 = vector.load %arg7[%c0_26, %c0_27] : memref<1x64xf32, #tpu.memory_space<vmem>>, vector<1x64xf32>
    %36 = vector.broadcast %35 : vector<1x64xf32> to vector<256x64xf32>
    %37 = arith.mulf %34, %36 : vector<256x64xf32>
    %cst_28 = arith.constant dense<0.000000e+00> : vector<256xf32>
    %38 = vector.multi_reduction <add>, %37, %cst_28 [1] : vector<256x64xf32> to vector<256xf32>
    %39 = vector.shape_cast %38 : vector<256xf32> to vector<256x1xf32>
    %c0_29 = arith.constant 0 : index
    %c0_30 = arith.constant 0 : index
    %40 = vector.load %arg8[%c0_29, %c0_30] : memref<1x1xf32, #tpu.memory_space<vmem>>, vector<1x1xf32>
    %41 = vector.broadcast %40 : vector<1x1xf32> to vector<256x1xf32>
    %42 = arith.addf %39, %41 : vector<256x1xf32>
    %c0_31 = arith.constant 0 : index
    %c0_32 = arith.constant 0 : index
    %43 = vector.load %arg9[%c0_31, %c0_32] : memref<256x1xf32, #tpu.memory_space<vmem>>, vector<256x1xf32>
    tpu.vector_store %arg9[%c0_31, %c0_32], %42 {strides = array<i32>} : memref<256x1xf32, #tpu.memory_space<vmem>>, vector<256x1xf32>,
    return
  }
  func.func @transform_0(%arg0: i32) -> (i32, i32) {
    %c0_i32 = arith.constant 0 : i32
    %c0_i32_0 = arith.constant 0 : i32
    return %arg0, %c0_i32 : i32, i32
  }
  func.func @transform_1(%arg0: i32) -> (i32, i32) {
    %c0_i32 = arith.constant 0 : i32
    %c0_i32_0 = arith.constant 0 : i32
    return %arg0, %c0_i32 : i32, i32
  }
  func.func @transform_2(%arg0: i32) -> (i32, i32) {
    %c0_i32 = arith.constant 0 : i32
    %c0_i32_0 = arith.constant 0 : i32
    %c0_i32_1 = arith.constant 0 : i32
    return %c0_i32, %c0_i32_0 : i32, i32
  }
  func.func @transform_3(%arg0: i32) -> (i32, i32) {
    %c0_i32 = arith.constant 0 : i32
    %c0_i32_0 = arith.constant 0 : i32
    %c0_i32_1 = arith.constant 0 : i32
    return %c0_i32, %c0_i32_0 : i32, i32
  }
  func.func @transform_4(%arg0: i32) -> (i32, i32) {
    %c0_i32 = arith.constant 0 : i32
    %c0_i32_0 = arith.constant 0 : i32
    %c0_i32_1 = arith.constant 0 : i32
    return %c0_i32, %c0_i32_0 : i32, i32
  }
  func.func @transform_5(%arg0: i32) -> (i32, i32) {
    %c0_i32 = arith.constant 0 : i32
    %c0_i32_0 = arith.constant 0 : i32
    %c0_i32_1 = arith.constant 0 : i32
    return %c0_i32, %c0_i32_0 : i32, i32
  }
  func.func @transform_6(%arg0: i32) -> (i32, i32) {
    %c0_i32 = arith.constant 0 : i32
    %c0_i32_0 = arith.constant 0 : i32
    %c0_i32_1 = arith.constant 0 : i32
    return %c0_i32, %c0_i32_0 : i32, i32
  }
  func.func @transform_7(%arg0: i32) -> (i32, i32) {
    %c0_i32 = arith.constant 0 : i32
    %c0_i32_0 = arith.constant 0 : i32
    %c0_i32_1 = arith.constant 0 : i32
    return %c0_i32, %c0_i32_0 : i32, i32
  }
  func.func @transform_8(%arg0: i32) -> (i32, i32) {
    %c0_i32 = arith.constant 0 : i32
    %c0_i32_0 = arith.constant 0 : i32
    return %arg0, %c0_i32 : i32, i32
  }
}

</mosaic_0001>

<llo_original>
// kernel: tpu_custom_call.1
$region0: #{tpu_custom_call.1}
  #allocation0 [shape = 'u32[]', space=smem, size = 0x4, offset = 0x4, fixed_abs, tag = 'smem constant byte address 0x4 - core index']
  #allocation1 [shape = 'u32[72,128]{1,0:T(1,128)}', space=vmem, size = 0x9000, scoped, tag = 'internal scratch']
  #allocation2 [shape = 'f32[1,1]{1,0:T(1,128)S(1)}', space=vmem, size = 0x200, scoped, tag = 'scoped memory for tpu_custom_call.1']
  %s0 = inlined_call_operand.vmem [shape: f32[256,32], index: 0, kind: input, shape index: {}]
  %s1 = inlined_call_operand.vmem [shape: f32[256,32], index: 1, kind: input, shape index: {}]
  %s2 = inlined_call_operand.vmem [shape: bf16[32,128], index: 2, kind: input, shape index: {}]
  %s3 = inlined_call_operand.vmem [shape: f32[1,128], index: 3, kind: input, shape index: {}]
  %s4 = inlined_call_operand.vmem [shape: bf16[128,64], index: 4, kind: input, shape index: {}]
  %s5 = inlined_call_operand.vmem [shape: f32[1,64], index: 5, kind: input, shape index: {}]
  %s6 = inlined_call_operand.vmem [shape: f32[1,64], index: 6, kind: input, shape index: {}]
  %s7 = inlined_call_operand.<no memory space> [shape: f32[1,1], index: 7, kind: input, shape index: {}]
  %s8 = inlined_call_operand.vmem [shape: f32[256,1], index: 8, kind: output, shape index: {}]
  %s9 = sld [smem:[#allocation0]]
  $region42: #{tpu_custom_call.1} parent=0
    _
  %s11 = ssub.s32 1, %s9
  %s12 = scalar_select 0, %s11, %s9
  %v13 = vstv %s7
  %14 = vst [vmem:[#allocation2] sm:$0x1] %v13
  // Predicated region
  $region2: #{tpu_custom_call.1} parent=0 // pred_check
    _
  $region3: #{tpu_custom_call.1} parent=0 // pred_check_branch
    %16 = sbr.rel (0) target = $region5
  $region4: #{tpu_custom_call.1} parent=0 // pred_region
    _
  $region5: #{tpu_custom_call.1} parent=0 // pred_fallthru
    _
  // Predicated region
  $region6: #{tpu_custom_call.1} parent=0 // pred_check
    _
  $region7: #{tpu_custom_call.1} parent=0 // pred_check_branch
    %18 = sbr.rel (0) target = $region9
  $region8: #{tpu_custom_call.1} parent=0 // pred_region
    _
  $region9: #{tpu_custom_call.1} parent=0 // pred_fallthru
    _
  // Predicated region
  $region10: #{tpu_custom_call.1} parent=0 // pred_check
    _
  $region11: #{tpu_custom_call.1} parent=0 // pred_check_branch
    %20 = sbr.rel (0) target = $region13
  $region12: #{tpu_custom_call.1} parent=0 // pred_region
    _
  $region13: #{tpu_custom_call.1} parent=0 // pred_fallthru
    _
  // Predicated region
  $region14: #{tpu_custom_call.1} parent=0 // pred_check
    _
  $region15: #{tpu_custom_call.1} parent=0 // pred_check_branch
    %22 = sbr.rel (0) target = $region17
  $region16: #{tpu_custom_call.1} parent=0 // pred_region
    _
  $region17: #{tpu_custom_call.1} parent=0 // pred_fallthru
    _
  // Predicated region
  $region18: #{tpu_custom_call.1} parent=0 // pred_check
    _
  $region19: #{tpu_custom_call.1} parent=0 // pred_check_branch
    %24 = sbr.rel (0) target = $region21
  $region20: #{tpu_custom_call.1} parent=0 // pred_region
    _
  $region21: #{tpu_custom_call.1} parent=0 // pred_fallthru
    _
  // Predicated region
  $region22: #{tpu_custom_call.1} parent=0 // pred_check
    _
  $region23: #{tpu_custom_call.1} parent=0 // pred_check_branch
    %26 = sbr.rel (0) target = $region25
  $region24: #{tpu_custom_call.1} parent=0 // pred_region
    _
  $region25: #{tpu_custom_call.1} parent=0 // pred_fallthru
    _
  // Predicated region
  $region26: #{tpu_custom_call.1} parent=0 // pred_check
    _
  $region27: #{tpu_custom_call.1} parent=0 // pred_check_branch
    %28 = sbr.rel (0) target = $region29
  $region28: #{tpu_custom_call.1} parent=0 // pred_region
    _
  $region29: #{tpu_custom_call.1} parent=0 // pred_fallthru
    _
  // Predicated region
  $region30: #{tpu_custom_call.1} parent=0 // pred_check
    _
  $region31: #{tpu_custom_call.1} parent=0 // pred_check_branch
    %30 = sbr.rel (0) target = $region33
  $region32: #{tpu_custom_call.1} parent=0 // pred_region
    _
  $region33: #{tpu_custom_call.1} parent=0 // pred_fallthru
    _
  %v32 = vld [vmem:[%s0] sm:$0xff]
  %v33 = vld [vmem:[%s0 + $0x8] sm:$0xff]
  %v34 = vld [vmem:[%s0 + $0x10] sm:$0xff]
  %v35 = vld [vmem:[%s0 + $0x18] sm:$0xff]
  %v36 = vld [vmem:[%s0 + $0x20] sm:$0xff]
  %v37 = vld [vmem:[%s0 + $0x28] sm:$0xff]
  %v38 = vld [vmem:[%s0 + $0x30] sm:$0xff]
  %v39 = vld [vmem:[%s0 + $0x38] sm:$0xff]
  %v40 = vld [vmem:[%s0 + $0x40] sm:$0xff]
  %v41 = vld [vmem:[%s0 + $0x48] sm:$0xff]
  %v42 = vld [vmem:[%s0 + $0x50] sm:$0xff]
  %v43 = vld [vmem:[%s0 + $0x58] sm:$0xff]
  %v44 = vld [vmem:[%s0 + $0x60] sm:$0xff]
  %v45 = vld [vmem:[%s0 + $0x68] sm:$0xff]
  %v46 = vld [vmem:[%s0 + $0x70] sm:$0xff]
  %v47 = vld [vmem:[%s0 + $0x78] sm:$0xff]
  %v48 = vld [vmem:[%s0 + $0x80] sm:$0xff]
  %v49 = vld [vmem:[%s0 + $0x88] sm:$0xff]
  %v50 = vld [vmem:[%s0 + $0x90] sm:$0xff]
  %v51 = vld [vmem:[%s0 + $0x98] sm:$0xff]
  %v52 = vld [vmem:[%s0 + $0xa0] sm:$0xff]
  %v53 = vld [vmem:[%s0 + $0xa8] sm:$0xff]
  %v54 = vld [vmem:[%s0 + $0xb0] sm:$0xff]
  %v55 = vld [vmem:[%s0 + $0xb8] sm:$0xff]
  %v56 = vld [vmem:[%s0 + $0xc0] sm:$0xff]
  %v57 = vld [vmem:[%s0 + $0xc8] sm:$0xff]
  %v58 = vld [vmem:[%s0 + $0xd0] sm:$0xff]
  %v59 = vld [vmem:[%s0 + $0xd8] sm:$0xff]
  %v60 = vld [vmem:[%s0 + $0xe0] sm:$0xff]
  %v61 = vld [vmem:[%s0 + $0xe8] sm:$0xff]
  %v62 = vld [vmem:[%s0 + $0xf0] sm:$0xff]
  %v63 = vld [vmem:[%s0 + $0xf8] sm:$0xff]
  %v64 = vpack.c.bf16 %v33, %v32
  %v65 = vpack.c.bf16 %v35, %v34
  %v66 = vpack.c.bf16 %v37, %v36
  %v67 = vpack.c.bf16 %v39, %v38
  %v68 = vpack.c.bf16 %v41, %v40
  %v69 = vpack.c.bf16 %v43, %v42
  %v70 = vpack.c.bf16 %v45, %v44
  %v71 = vpack.c.bf16 %v47, %v46
  %v72 = vpack.c.bf16 %v49, %v48
  %v73 = vpack.c.bf16 %v51, %v50
  %v74 = vpack.c.bf16 %v53, %v52
  %v75 = vpack.c.bf16 %v55, %v54
  %v76 = vpack.c.bf16 %v57, %v56
  %v77 = vpack.c.bf16 %v59, %v58
  %v78 = vpack.c.bf16 %v61, %v60
  %v79 = vpack.c.bf16 %v63, %v62
  %v80 = vld [vmem:[%s2] sm:$0xf]
  %v81 = vld [vmem:[%s2 + $0x4] sm:$0xf]
  %v82 = vld [vmem:[%s2 + $0x8] sm:$0xf]
  %v83 = vld [vmem:[%s2 + $0xc] sm:$0xf]
  %v84 = vld [vmem:[%s3] sm:$0x1]
  %v86 = vperm.slane %v84, 0
  %v92 = vunpack.c.l.b16 %v80
  %v93 = vunpack.c.l.b16 %v81
  %v94 = vunpack.c.l.b16 %v82
  %v95 = vunpack.c.l.b16 %v83
  %v96 = vpack.c.b16 %v93, %v92
  %v97 = vpack.c.b16 %v95, %v94
  %vm100 = vcmask 261120
  %v102 = vsel %vm100, %v64, 0
  %v105 = vsel %vm100, %v65, 0
  %v108 = vsel %vm100, %v66, 0
  %v111 = vsel %vm100, %v67, 0
  %v114 = vsel %vm100, %v68, 0
  %v117 = vsel %vm100, %v69, 0
  %v120 = vsel %vm100, %v70, 0
  %v123 = vsel %vm100, %v71, 0
  %v126 = vsel %vm100, %v72, 0
  %v129 = vsel %vm100, %v73, 0
  %v132 = vsel %vm100, %v74, 0
  %v135 = vsel %vm100, %v75, 0
  %v138 = vsel %vm100, %v76, 0
  %v141 = vsel %vm100, %v77, 0
  %v144 = vsel %vm100, %v78, 0
  %v147 = vsel %vm100, %v79, 0
  %149 = vmatpush.bf16.msra.mxu0 0
  %150 = vmatpush.bf16.msra.mxu0 0
  %151 = vmatpush.bf16.msra.mxu0 0
  %152 = vmatpush.bf16.msra.mxu0 0
  %153 = vmatpush.bf16.msra.mxu0 0
  %154 = vmatpush.bf16.msra.mxu0 0
  %155 = vmatpush.bf16.msra.mxu0 %v97
  %156 = vmatpush.bf16.msra.mxu0 %v96
  %157 = vmatmul.bf16.gmra.mxu0 %v102
  %v158 = vpop.f32.mrf.mxu0
  %v159 = vadd.f32 %v86, %v158
  %v160 = vpop.f32.mrf.mxu0
  %v161 = vadd.f32 %v86, %v160
  %162 = vmatmul.bf16.gmra.mxu0 %v105
  %v163 = vpop.f32.mrf.mxu0
  %v164 = vadd.f32 %v86, %v163
  %v165 = vpop.f32.mrf.mxu0
  %v166 = vadd.f32 %v86, %v165
  %167 = vmatmul.bf16.gmra.mxu0 %v108
  %v168 = vpop.f32.mrf.mxu0
  %v169 = vadd.f32 %v86, %v168
  %v170 = vpop.f32.mrf.mxu0
  %v171 = vadd.f32 %v86, %v170
  %172 = vmatmul.bf16.gmra.mxu0 %v111
  %v173 = vpop.f32.mrf.mxu0
  %v174 = vadd.f32 %v86, %v173
  %v175 = vpop.f32.mrf.mxu0
  %v176 = vadd.f32 %v86, %v175
  %177 = vmatmul.bf16.gmra.mxu0 %v114
  %v178 = vpop.f32.mrf.mxu0
  %v179 = vadd.f32 %v86, %v178
  %v180 = vpop.f32.mrf.mxu0
  %v181 = vadd.f32 %v86, %v180
  %182 = vmatmul.bf16.gmra.mxu0 %v117
  %v183 = vpop.f32.mrf.mxu0
  %v184 = vadd.f32 %v86, %v183
  %v185 = vpop.f32.mrf.mxu0
  %v186 = vadd.f32 %v86, %v185
  %187 = vmatmul.bf16.gmra.mxu0 %v120
  %v188 = vpop.f32.mrf.mxu0
  %v189 = vadd.f32 %v86, %v188
  %v190 = vpop.f32.mrf.mxu0
  %v191 = vadd.f32 %v86, %v190
  %192 = vmatmul.bf16.gmra.mxu0 %v123
  %v193 = vpop.f32.mrf.mxu0
  %v194 = vadd.f32 %v86, %v193
  %v195 = vpop.f32.mrf.mxu0
  %v196 = vadd.f32 %v86, %v195
  %197 = vmatmul.bf16.gmra.mxu0 %v126
  %v198 = vpop.f32.mrf.mxu0
  %v199 = vadd.f32 %v86, %v198
  %v200 = vpop.f32.mrf.mxu0
  %v201 = vadd.f32 %v86, %v200
  %202 = vmatmul.bf16.gmra.mxu0 %v129
  %v203 = vpop.f32.mrf.mxu0
  %v204 = vadd.f32 %v86, %v203
  %v205 = vpop.f32.mrf.mxu0
  %v206 = vadd.f32 %v86, %v205
  %207 = vmatmul.bf16.gmra.mxu0 %v132
  %v208 = vpop.f32.mrf.mxu0
  %v209 = vadd.f32 %v86, %v208
  %v210 = vpop.f32.mrf.mxu0
  %v211 = vadd.f32 %v86, %v210
  %212 = vmatmul.bf16.gmra.mxu0 %v135
  %v213 = vpop.f32.mrf.mxu0
  %v214 = vadd.f32 %v86, %v213
  %v215 = vpop.f32.mrf.mxu0
  %v216 = vadd.f32 %v86, %v215
  %217 = vmatmul.bf16.gmra.mxu0 %v138
  %v218 = vpop.f32.mrf.mxu0
  %v219 = vadd.f32 %v86, %v218
  %v220 = vpop.f32.mrf.mxu0
  %v221 = vadd.f32 %v86, %v220
  %222 = vmatmul.bf16.gmra.mxu0 %v141
  %v223 = vpop.f32.mrf.mxu0
  %v224 = vadd.f32 %v86, %v223
  %v225 = vpop.f32.mrf.mxu0
  %v226 = vadd.f32 %v86, %v225
  %227 = vmatmul.bf16.gmra.mxu0 %v144
  %v228 = vpop.f32.mrf.mxu0
  %v229 = vadd.f32 %v86, %v228
  %v230 = vpop.f32.mrf.mxu0
  %v231 = vadd.f32 %v86, %v230
  %232 = vmatmul.bf16.gmra.mxu0 %v147
  %v233 = vpop.f32.mrf.mxu0
  %v234 = vadd.f32 %v86, %v233
  %v235 = vpop.f32.mrf.mxu0
  %v236 = vadd.f32 %v86, %v235
  %237 = vdwg.mxu0
  %v238 = vmax.f32 %v159, 0.0
  %v239 = vmax.f32 %v161, 0.0
  %v240 = vmax.f32 %v164, 0.0
  %v241 = vmax.f32 %v166, 0.0
  %v242 = vmax.f32 %v169, 0.0
  %v243 = vmax.f32 %v171, 0.0
  %v244 = vmax.f32 %v174, 0.0
  %v245 = vmax.f32 %v176, 0.0
  %v246 = vmax.f32 %v179, 0.0
  %v247 = vmax.f32 %v181, 0.0
  %v248 = vmax.f32 %v184, 0.0
  %v249 = vmax.f32 %v186, 0.0
  %v250 = vmax.f32 %v189, 0.0
  %v251 = vmax.f32 %v191, 0.0
  %v252 = vmax.f32 %v194, 0.0
  %v253 = vmax.f32 %v196, 0.0
  %v254 = vmax.f32 %v199, 0.0
  %v255 = vmax.f32 %v201, 0.0
  %v256 = vmax.f32 %v204, 0.0
  %v257 = vmax.f32 %v206, 0.0
  %v258 = vmax.f32 %v209, 0.0
  %v259 = vmax.f32 %v211, 0.0
  %v260 = vmax.f32 %v214, 0.0
  %v261 = vmax.f32 %v216, 0.0
  %v262 = vmax.f32 %v219, 0.0
  %v263 = vmax.f32 %v221, 0.0
  %v264 = vmax.f32 %v224, 0.0
  %v265 = vmax.f32 %v226, 0.0
  %v266 = vmax.f32 %v229, 0.0
  %v267 = vmax.f32 %v231, 0.0
  %v268 = vmax.f32 %v234, 0.0
  %v269 = vmax.f32 %v236, 0.0
  %v270 = vpack.c.bf16 %v239, %v238
  %v271 = vpack.c.bf16 %v241, %v240
  %v272 = vpack.c.bf16 %v243, %v242
  %v273 = vpack.c.bf16 %v245, %v244
  %v274 = vpack.c.bf16 %v247, %v246
  %v275 = vpack.c.bf16 %v249, %v248
  %v276 = vpack.c.bf16 %v251, %v250
  %v277 = vpack.c.bf16 %v253, %v252
  %v278 = vpack.c.bf16 %v255, %v254
  %v279 = vpack.c.bf16 %v257, %v256
  %v280 = vpack.c.bf16 %v259, %v258
  %v281 = vpack.c.bf16 %v261, %v260
  %v282 = vpack.c.bf16 %v263, %v262
  %v283 = vpack.c.bf16 %v265, %v264
  %v284 = vpack.c.bf16 %v267, %v266
  %v285 = vpack.c.bf16 %v269, %v268
  %v286 = vld [vmem:[%s4] sm:$0xf]
  %v287 = vld [vmem:[%s4 + $0x4] sm:$0xf]
  %v288 = vld [vmem:[%s4 + $0x8] sm:$0xf]
  %v289 = vld [vmem:[%s4 + $0xc] sm:$0xf]
  %v290 = vld [vmem:[%s4 + $0x10] sm:$0xf]
  %v291 = vld [vmem:[%s4 + $0x14] sm:$0xf]
  %v292 = vld [vmem:[%s4 + $0x18] sm:$0xf]
  %v293 = vld [vmem:[%s4 + $0x1c] sm:$0xf]
  %v294 = vld [vmem:[%s4 + $0x20] sm:$0xf]
  %v295 = vld [vmem:[%s4 + $0x24] sm:$0xf]
  %v296 = vld [vmem:[%s4 + $0x28] sm:$0xf]
  %v297 = vld [vmem:[%s4 + $0x2c] sm:$0xf]
  %v298 = vld [vmem:[%s4 + $0x30] sm:$0xf]
  %v299 = vld [vmem:[%s4 + $0x34] sm:$0xf]
  %v300 = vld [vmem:[%s4 + $0x38] sm:$0xf]
  %v301 = vld [vmem:[%s4 + $0x3c] sm:$0xf]
  %v302 = vld [vmem:[%s5] sm:$0x1]
  %v304 = vperm.slane %v302, 0
  %v322 = vunpack.c.l.b16 %v286
  %v323 = vunpack.c.l.b16 %v287
  %v324 = vunpack.c.l.b16 %v288
  %v325 = vunpack.c.l.b16 %v289
  %v326 = vunpack.c.l.b16 %v290
  %v327 = vunpack.c.l.b16 %v291
  %v328 = vunpack.c.l.b16 %v292
  %v329 = vunpack.c.l.b16 %v293
  %v330 = vunpack.c.l.b16 %v294
  %v331 = vunpack.c.l.b16 %v295
  %v332 = vunpack.c.l.b16 %v296
  %v333 = vunpack.c.l.b16 %v297
  %v334 = vunpack.c.l.b16 %v298
  %v335 = vunpack.c.l.b16 %v299
  %v336 = vunpack.c.l.b16 %v300
  %v337 = vunpack.c.l.b16 %v301
  %v338 = vpack.c.b16 %v323, %v322
  %v339 = vpack.c.b16 %v325, %v324
  %v340 = vpack.c.b16 %v327, %v326
  %v341 = vpack.c.b16 %v329, %v328
  %v342 = vpack.c.b16 %v331, %v330
  %v343 = vpack.c.b16 %v333, %v332
  %v344 = vpack.c.b16 %v335, %v334
  %v345 = vpack.c.b16 %v337, %v336
  %354 = vmatpush.bf16.msra.mxu0 %v345
  %355 = vmatpush.bf16.msra.mxu0 %v344
  %356 = vmatpush.bf16.msra.mxu0 %v343
  %357 = vmatpush.bf16.msra.mxu0 %v342
  %358 = vmatpush.bf16.msra.mxu0 %v341
  %359 = vmatpush.bf16.msra.mxu0 %v340
  %360 = vmatpush.bf16.msra.mxu0 %v339
  %361 = vmatpush.bf16.msra.mxu0 %v338
  %362 = vmatmul.bf16.gmra.mxu0 %v270
  %v363 = vpop.f32.mrf.mxu0
  %v364 = vadd.f32 %v304, %v363
  %v365 = vpop.f32.mrf.mxu0
  %v366 = vadd.f32 %v304, %v365
  %367 = vmatmul.bf16.gmra.mxu0 %v271
  %v368 = vpop.f32.mrf.mxu0
  %v369 = vadd.f32 %v304, %v368
  %v370 = vpop.f32.mrf.mxu0
  %v371 = vadd.f32 %v304, %v370
  %372 = vmatmul.bf16.gmra.mxu0 %v272
  %v373 = vpop.f32.mrf.mxu0
  %v374 = vadd.f32 %v304, %v373
  %v375 = vpop.f32.mrf.mxu0
  %v376 = vadd.f32 %v304, %v375
  %377 = vmatmul.bf16.gmra.mxu0 %v273
  %v378 = vpop.f32.mrf.mxu0
  %v379 = vadd.f32 %v304, %v378
  %v380 = vpop.f32.mrf.mxu0
  %v381 = vadd.f32 %v304, %v380
  %382 = vmatmul.bf16.gmra.mxu0 %v274
  %v383 = vpop.f32.mrf.mxu0
  %v384 = vadd.f32 %v304, %v383
  %v385 = vpop.f32.mrf.mxu0
  %v386 = vadd.f32 %v304, %v385
  %387 = vmatmul.bf16.gmra.mxu0 %v275
  %v388 = vpop.f32.mrf.mxu0
  %v389 = vadd.f32 %v304, %v388
  %v390 = vpop.f32.mrf.mxu0
  %v391 = vadd.f32 %v304, %v390
  %392 = vmatmul.bf16.gmra.mxu0 %v276
  %v393 = vpop.f32.mrf.mxu0
  %v394 = vadd.f32 %v304, %v393
  %v395 = vpop.f32.mrf.mxu0
  %v396 = vadd.f32 %v304, %v395
  %397 = vmatmul.bf16.gmra.mxu0 %v277
  %v398 = vpop.f32.mrf.mxu0
  %v399 = vadd.f32 %v304, %v398
  %v400 = vpop.f32.mrf.mxu0
  %v401 = vadd.f32 %v304, %v400
  %402 = vmatmul.bf16.gmra.mxu0 %v278
  %v403 = vpop.f32.mrf.mxu0
  %v404 = vadd.f32 %v304, %v403
  %v405 = vpop.f32.mrf.mxu0
  %v406 = vadd.f32 %v304, %v405
  %407 = vmatmul.bf16.gmra.mxu0 %v279
  %v408 = vpop.f32.mrf.mxu0
  %v409 = vadd.f32 %v304, %v408
  %v410 = vpop.f32.mrf.mxu0
  %v411 = vadd.f32 %v304, %v410
  %412 = vmatmul.bf16.gmra.mxu0 %v280
  %v413 = vpop.f32.mrf.mxu0
  %v414 = vadd.f32 %v304, %v413
  %v415 = vpop.f32.mrf.mxu0
  %v416 = vadd.f32 %v304, %v415
  %417 = vmatmul.bf16.gmra.mxu0 %v281
  %v418 = vpop.f32.mrf.mxu0
  %v419 = vadd.f32 %v304, %v418
  %v420 = vpop.f32.mrf.mxu0
  %v421 = vadd.f32 %v304, %v420
  %422 = vmatmul.bf16.gmra.mxu0 %v282
  %v423 = vpop.f32.mrf.mxu0
  %v424 = vadd.f32 %v304, %v423
  %v425 = vpop.f32.mrf.mxu0
  %v426 = vadd.f32 %v304, %v425
  %427 = vmatmul.bf16.gmra.mxu0 %v283
  %v428 = vpop.f32.mrf.mxu0
  %v429 = vadd.f32 %v304, %v428
  %v430 = vpop.f32.mrf.mxu0
  %v431 = vadd.f32 %v304, %v430
  %432 = vmatmul.bf16.gmra.mxu0 %v284
  %v433 = vpop.f32.mrf.mxu0
  %v434 = vadd.f32 %v304, %v433
  %v435 = vpop.f32.mrf.mxu0
  %v436 = vadd.f32 %v304, %v435
  %437 = vmatmul.bf16.gmra.mxu0 %v285
  %v438 = vpop.f32.mrf.mxu0
  %v439 = vadd.f32 %v304, %v438
  %v440 = vpop.f32.mrf.mxu0
  %v441 = vadd.f32 %v304, %v440
  %442 = vdwg.mxu0
  %v443 = vmax.f32 %v364, 0.0
  %v444 = vmax.f32 %v366, 0.0
  %v445 = vmax.f32 %v369, 0.0
  %v446 = vmax.f32 %v371, 0.0
  %v447 = vmax.f32 %v374, 0.0
  %v448 = vmax.f32 %v376, 0.0
  %v449 = vmax.f32 %v379, 0.0
  %v450 = vmax.f32 %v381, 0.0
  %v451 = vmax.f32 %v384, 0.0
  %v452 = vmax.f32 %v386, 0.0
  %v453 = vmax.f32 %v389, 0.0
  %v454 = vmax.f32 %v391, 0.0
  %v455 = vmax.f32 %v394, 0.0
  %v456 = vmax.f32 %v396, 0.0
  %v457 = vmax.f32 %v399, 0.0
  %v458 = vmax.f32 %v401, 0.0
  %v459 = vmax.f32 %v404, 0.0
  %v460 = vmax.f32 %v406, 0.0
  %v461 = vmax.f32 %v409, 0.0
  %v462 = vmax.f32 %v411, 0.0
  %v463 = vmax.f32 %v414, 0.0
  %v464 = vmax.f32 %v416, 0.0
  %v465 = vmax.f32 %v419, 0.0
  %v466 = vmax.f32 %v421, 0.0
  %v467 = vmax.f32 %v424, 0.0
  %v468 = vmax.f32 %v426, 0.0
  %v469 = vmax.f32 %v429, 0.0
  %v470 = vmax.f32 %v431, 0.0
  %v471 = vmax.f32 %v434, 0.0
  %v472 = vmax.f32 %v436, 0.0
  %v473 = vmax.f32 %v439, 0.0
  %v474 = vmax.f32 %v441, 0.0
  %v475 = vld [vmem:[%s1] sm:$0xff]
  %v476 = vld [vmem:[%s1 + $0x8] sm:$0xff]
  %v477 = vld [vmem:[%s1 + $0x10] sm:$0xff]
  %v478 = vld [vmem:[%s1 + $0x18] sm:$0xff]
  %v479 = vld [vmem:[%s1 + $0x20] sm:$0xff]
  %v480 = vld [vmem:[%s1 + $0x28] sm:$0xff]
  %v481 = vld [vmem:[%s1 + $0x30] sm:$0xff]
  %v482 = vld [vmem:[%s1 + $0x38] sm:$0xff]
  %v483 = vld [vmem:[%s1 + $0x40] sm:$0xff]
  %v484 = vld [vmem:[%s1 + $0x48] sm:$0xff]
  %v485 = vld [vmem:[%s1 + $0x50] sm:$0xff]
  %v486 = vld [vmem:[%s1 + $0x58] sm:$0xff]
  %v487 = vld [vmem:[%s1 + $0x60] sm:$0xff]
  %v488 = vld [vmem:[%s1 + $0x68] sm:$0xff]
  %v489 = vld [vmem:[%s1 + $0x70] sm:$0xff]
  %v490 = vld [vmem:[%s1 + $0x78] sm:$0xff]
  %v491 = vld [vmem:[%s1 + $0x80] sm:$0xff]
  %v492 = vld [vmem:[%s1 + $0x88] sm:$0xff]
  %v493 = vld [vmem:[%s1 + $0x90] sm:$0xff]
  %v494 = vld [vmem:[%s1 + $0x98] sm:$0xff]
  %v495 = vld [vmem:[%s1 + $0xa0] sm:$0xff]
  %v496 = vld [vmem:[%s1 + $0xa8] sm:$0xff]
  %v497 = vld [vmem:[%s1 + $0xb0] sm:$0xff]
  %v498 = vld [vmem:[%s1 + $0xb8] sm:$0xff]
  %v499 = vld [vmem:[%s1 + $0xc0] sm:$0xff]
  %v500 = vld [vmem:[%s1 + $0xc8] sm:$0xff]
  %v501 = vld [vmem:[%s1 + $0xd0] sm:$0xff]
  %v502 = vld [vmem:[%s1 + $0xd8] sm:$0xff]
  %v503 = vld [vmem:[%s1 + $0xe0] sm:$0xff]
  %v504 = vld [vmem:[%s1 + $0xe8] sm:$0xff]
  %v505 = vld [vmem:[%s1 + $0xf0] sm:$0xff]
  %v506 = vld [vmem:[%s1 + $0xf8] sm:$0xff]
  %v507 = vpack.c.bf16 %v476, %v475
  %v508 = vpack.c.bf16 %v478, %v477
  %v509 = vpack.c.bf16 %v480, %v479
  %v510 = vpack.c.bf16 %v482, %v481
  %v511 = vpack.c.bf16 %v484, %v483
  %v512 = vpack.c.bf16 %v486, %v485
  %v513 = vpack.c.bf16 %v488, %v487
  %v514 = vpack.c.bf16 %v490, %v489
  %v515 = vpack.c.bf16 %v492, %v491
  %v516 = vpack.c.bf16 %v494, %v493
  %v517 = vpack.c.bf16 %v496, %v495
  %v518 = vpack.c.bf16 %v498, %v497
  %v519 = vpack.c.bf16 %v500, %v499
  %v520 = vpack.c.bf16 %v502, %v501
  %v521 = vpack.c.bf16 %v504, %v503
  %v522 = vpack.c.bf16 %v506, %v505
  %v524 = vsel %vm100, %v507, 0
  %v527 = vsel %vm100, %v508, 0
  %v530 = vsel %vm100, %v509, 0
  %v533 = vsel %vm100, %v510, 0
  %v536 = vsel %vm100, %v511, 0
  %v539 = vsel %vm100, %v512, 0
  %v542 = vsel %vm100, %v513, 0
  %v545 = vsel %vm100, %v514, 0
  %v548 = vsel %vm100, %v515, 0
  %v551 = vsel %vm100, %v516, 0
  %v554 = vsel %vm100, %v517, 0
  %v557 = vsel %vm100, %v518, 0
  %v560 = vsel %vm100, %v519, 0
  %v563 = vsel %vm100, %v520, 0
  %v566 = vsel %vm100, %v521, 0
  %v569 = vsel %vm100, %v522, 0
  %571 = vmatpush.bf16.msra.mxu0 0
  %572 = vmatpush.bf16.msra.mxu0 0
  %573 = vmatpush.bf16.msra.mxu0 0
  %574 = vmatpush.bf16.msra.mxu0 0
  %575 = vmatpush.bf16.msra.mxu0 0
  %576 = vmatpush.bf16.msra.mxu0 0
  %577 = vmatpush.bf16.msra.mxu0 %v97
  %578 = vmatpush.bf16.msra.mxu0 %v96
  %579 = vmatmul.bf16.gmra.mxu0 %v524
  %v580 = vpop.f32.mrf.mxu0
  %v581 = vadd.f32 %v86, %v580
  %v582 = vpop.f32.mrf.mxu0
  %v583 = vadd.f32 %v86, %v582
  %584 = vmatmul.bf16.gmra.mxu0 %v527
  %v585 = vpop.f32.mrf.mxu0
  %v586 = vadd.f32 %v86, %v585
  %v587 = vpop.f32.mrf.mxu0
  %v588 = vadd.f32 %v86, %v587
  %589 = vmatmul.bf16.gmra.mxu0 %v530
  %v590 = vpop.f32.mrf.mxu0
  %v591 = vadd.f32 %v86, %v590
  %v592 = vpop.f32.mrf.mxu0
  %v593 = vadd.f32 %v86, %v592
  %594 = vmatmul.bf16.gmra.mxu0 %v533
  %v595 = vpop.f32.mrf.mxu0
  %v596 = vadd.f32 %v86, %v595
  %v597 = vpop.f32.mrf.mxu0
  %v598 = vadd.f32 %v86, %v597
  %599 = vmatmul.bf16.gmra.mxu0 %v536
  %v600 = vpop.f32.mrf.mxu0
  %v601 = vadd.f32 %v86, %v600
  %v602 = vpop.f32.mrf.mxu0
  %v603 = vadd.f32 %v86, %v602
  %604 = vmatmul.bf16.gmra.mxu0 %v539
  %v605 = vpop.f32.mrf.mxu0
  %v606 = vadd.f32 %v86, %v605
  %v607 = vpop.f32.mrf.mxu0
  %v608 = vadd.f32 %v86, %v607
  %609 = vmatmul.bf16.gmra.mxu0 %v542
  %v610 = vpop.f32.mrf.mxu0
  %v611 = vadd.f32 %v86, %v610
  %v612 = vpop.f32.mrf.mxu0
  %v613 = vadd.f32 %v86, %v612
  %614 = vmatmul.bf16.gmra.mxu0 %v545
  %v615 = vpop.f32.mrf.mxu0
  %v616 = vadd.f32 %v86, %v615
  %v617 = vpop.f32.mrf.mxu0
  %v618 = vadd.f32 %v86, %v617
  %619 = vmatmul.bf16.gmra.mxu0 %v548
  %v620 = vpop.f32.mrf.mxu0
  %v621 = vadd.f32 %v86, %v620
  %v622 = vpop.f32.mrf.mxu0
  %v623 = vadd.f32 %v86, %v622
  %624 = vmatmul.bf16.gmra.mxu0 %v551
  %v625 = vpop.f32.mrf.mxu0
  %v626 = vadd.f32 %v86, %v625
  %v627 = vpop.f32.mrf.mxu0
  %v628 = vadd.f32 %v86, %v627
  %629 = vmatmul.bf16.gmra.mxu0 %v554
  %v630 = vpop.f32.mrf.mxu0
  %v631 = vadd.f32 %v86, %v630
  %v632 = vpop.f32.mrf.mxu0
  %v633 = vadd.f32 %v86, %v632
  %634 = vmatmul.bf16.gmra.mxu0 %v557
  %v635 = vpop.f32.mrf.mxu0
  %v636 = vadd.f32 %v86, %v635
  %v637 = vpop.f32.mrf.mxu0
  %v638 = vadd.f32 %v86, %v637
  %639 = vmatmul.bf16.gmra.mxu0 %v560
  %v640 = vpop.f32.mrf.mxu0
  %v641 = vadd.f32 %v86, %v640
  %v642 = vpop.f32.mrf.mxu0
  %v643 = vadd.f32 %v86, %v642
  %644 = vmatmul.bf16.gmra.mxu0 %v563
  %v645 = vpop.f32.mrf.mxu0
  %v646 = vadd.f32 %v86, %v645
  %v647 = vpop.f32.mrf.mxu0
  %v648 = vadd.f32 %v86, %v647
  %649 = vmatmul.bf16.gmra.mxu0 %v566
  %v650 = vpop.f32.mrf.mxu0
  %v651 = vadd.f32 %v86, %v650
  %v652 = vpop.f32.mrf.mxu0
  %v653 = vadd.f32 %v86, %v652
  %654 = vmatmul.bf16.gmra.mxu0 %v569
  %v655 = vpop.f32.mrf.mxu0
  %v656 = vadd.f32 %v86, %v655
  %v657 = vpop.f32.mrf.mxu0
  %v658 = vadd.f32 %v86, %v657
  %659 = vdwg.mxu0
  %v660 = vmax.f32 %v581, 0.0
  %v661 = vmax.f32 %v583, 0.0
  %v662 = vmax.f32 %v586, 0.0
  %v663 = vmax.f32 %v588, 0.0
  %v664 = vmax.f32 %v591, 0.0
  %v665 = vmax.f32 %v593, 0.0
  %v666 = vmax.f32 %v596, 0.0
  %v667 = vmax.f32 %v598, 0.0
  %v668 = vmax.f32 %v601, 0.0
  %v669 = vmax.f32 %v603, 0.0
  %v670 = vmax.f32 %v606, 0.0
  %v671 = vmax.f32 %v608, 0.0
  %v672 = vmax.f32 %v611, 0.0
  %v673 = vmax.f32 %v613, 0.0
  %v674 = vmax.f32 %v616, 0.0
  %v675 = vmax.f32 %v618, 0.0
  %v676 = vmax.f32 %v621, 0.0
  %v677 = vmax.f32 %v623, 0.0
  %v678 = vmax.f32 %v626, 0.0
  %v679 = vmax.f32 %v628, 0.0
  %v680 = vmax.f32 %v631, 0.0
  %v681 = vmax.f32 %v633, 0.0
  %v682 = vmax.f32 %v636, 0.0
  %v683 = vmax.f32 %v638, 0.0
  %v684 = vmax.f32 %v641, 0.0
  %v685 = vmax.f32 %v643, 0.0
  %v686 = vmax.f32 %v646, 0.0
  %v687 = vmax.f32 %v648, 0.0
  %v688 = vmax.f32 %v651, 0.0
  %v689 = vmax.f32 %v653, 0.0
  %v690 = vmax.f32 %v656, 0.0
  %v691 = vmax.f32 %v658, 0.0
  %v692 = vpack.c.bf16 %v661, %v660
  %v693 = vpack.c.bf16 %v663, %v662
  %v694 = vpack.c.bf16 %v665, %v664
  %v695 = vpack.c.bf16 %v667, %v666
  %v696 = vpack.c.bf16 %v669, %v668
  %v697 = vpack.c.bf16 %v671, %v670
  %v698 = vpack.c.bf16 %v673, %v672
  %v699 = vpack.c.bf16 %v675, %v674
  %v700 = vpack.c.bf16 %v677, %v676
  %v701 = vpack.c.bf16 %v679, %v678
  %v702 = vpack.c.bf16 %v681, %v680
  %v703 = vpack.c.bf16 %v683, %v682
  %v704 = vpack.c.bf16 %v685, %v684
  %v705 = vpack.c.bf16 %v687, %v686
  %v706 = vpack.c.bf16 %v689, %v688
  %v707 = vpack.c.bf16 %v691, %v690
  %708 = vmatpush.bf16.msra.mxu0 %v345
  %709 = vmatpush.bf16.msra.mxu0 %v344
  %710 = vmatpush.bf16.msra.mxu0 %v343
  %711 = vmatpush.bf16.msra.mxu0 %v342
  %712 = vmatpush.bf16.msra.mxu0 %v341
  %713 = vmatpush.bf16.msra.mxu0 %v340
  %714 = vmatpush.bf16.msra.mxu0 %v339
  %715 = vmatpush.bf16.msra.mxu0 %v338
  %716 = vmatmul.bf16.gmra.mxu0 %v692
  %v717 = vpop.f32.mrf.mxu0
  %v718 = vadd.f32 %v304, %v717
  %v719 = vpop.f32.mrf.mxu0
  %v720 = vadd.f32 %v304, %v719
  %721 = vmatmul.bf16.gmra.mxu0 %v693
  %v722 = vpop.f32.mrf.mxu0
  %v723 = vadd.f32 %v304, %v722
  %v724 = vpop.f32.mrf.mxu0
  %v725 = vadd.f32 %v304, %v724
  %726 = vmatmul.bf16.gmra.mxu0 %v694
  %v727 = vpop.f32.mrf.mxu0
  %v728 = vadd.f32 %v304, %v727
  %v729 = vpop.f32.mrf.mxu0
  %v730 = vadd.f32 %v304, %v729
  %731 = vmatmul.bf16.gmra.mxu0 %v695
  %v732 = vpop.f32.mrf.mxu0
  %v733 = vadd.f32 %v304, %v732
  %v734 = vpop.f32.mrf.mxu0
  %v735 = vadd.f32 %v304, %v734
  %736 = vmatmul.bf16.gmra.mxu0 %v696
  %v737 = vpop.f32.mrf.mxu0
  %v738 = vadd.f32 %v304, %v737
  %v739 = vpop.f32.mrf.mxu0
  %v740 = vadd.f32 %v304, %v739
  %741 = vmatmul.bf16.gmra.mxu0 %v697
  %v742 = vpop.f32.mrf.mxu0
  %v743 = vadd.f32 %v304, %v742
  %v744 = vpop.f32.mrf.mxu0
  %v745 = vadd.f32 %v304, %v744
  %746 = vmatmul.bf16.gmra.mxu0 %v698
  %v747 = vpop.f32.mrf.mxu0
  %v748 = vadd.f32 %v304, %v747
  %v749 = vpop.f32.mrf.mxu0
  %v750 = vadd.f32 %v304, %v749
  %751 = vmatmul.bf16.gmra.mxu0 %v699
  %v752 = vpop.f32.mrf.mxu0
  %v753 = vadd.f32 %v304, %v752
  %v754 = vpop.f32.mrf.mxu0
  %v755 = vadd.f32 %v304, %v754
  %756 = vmatmul.bf16.gmra.mxu0 %v700
  %v757 = vpop.f32.mrf.mxu0
  %v758 = vadd.f32 %v304, %v757
  %v759 = vpop.f32.mrf.mxu0
  %v760 = vadd.f32 %v304, %v759
  %761 = vmatmul.bf16.gmra.mxu0 %v701
  %v762 = vpop.f32.mrf.mxu0
  %v763 = vadd.f32 %v304, %v762
  %v764 = vpop.f32.mrf.mxu0
  %v765 = vadd.f32 %v304, %v764
  %766 = vmatmul.bf16.gmra.mxu0 %v702
  %v767 = vpop.f32.mrf.mxu0
  %v768 = vadd.f32 %v304, %v767
  %v769 = vpop.f32.mrf.mxu0
  %v770 = vadd.f32 %v304, %v769
  %771 = vmatmul.bf16.gmra.mxu0 %v703
  %v772 = vpop.f32.mrf.mxu0
  %v773 = vadd.f32 %v304, %v772
  %v774 = vpop.f32.mrf.mxu0
  %v775 = vadd.f32 %v304, %v774
  %776 = vmatmul.bf16.gmra.mxu0 %v704
  %v777 = vpop.f32.mrf.mxu0
  %v778 = vadd.f32 %v304, %v777
  %v779 = vpop.f32.mrf.mxu0
  %v780 = vadd.f32 %v304, %v779
  %781 = vmatmul.bf16.gmra.mxu0 %v705
  %v782 = vpop.f32.mrf.mxu0
  %v783 = vadd.f32 %v304, %v782
  %v784 = vpop.f32.mrf.mxu0
  %v785 = vadd.f32 %v304, %v784
  %786 = vmatmul.bf16.gmra.mxu0 %v706
  %v787 = vpop.f32.mrf.mxu0
  %v788 = vadd.f32 %v304, %v787
  %v789 = vpop.f32.mrf.mxu0
  %v790 = vadd.f32 %v304, %v789
  %791 = vmatmul.bf16.gmra.mxu0 %v707
  %v792 = vpop.f32.mrf.mxu0
  %v793 = vadd.f32 %v304, %v792
  %v794 = vpop.f32.mrf.mxu0
  %v795 = vadd.f32 %v304, %v794
  %796 = vdwg.mxu0
  %v797 = vmax.f32 %v718, 0.0
  %v798 = vmax.f32 %v720, 0.0
  %v799 = vmax.f32 %v723, 0.0
  %v800 = vmax.f32 %v725, 0.0
  %v801 = vmax.f32 %v728, 0.0
  %v802 = vmax.f32 %v730, 0.0
  %v803 = vmax.f32 %v733, 0.0
  %v804 = vmax.f32 %v735, 0.0
  %v805 = vmax.f32 %v738, 0.0
  %v806 = vmax.f32 %v740, 0.0
  %v807 = vmax.f32 %v743, 0.0
  %v808 = vmax.f32 %v745, 0.0
  %v809 = vmax.f32 %v748, 0.0
  %v810 = vmax.f32 %v750, 0.0
  %v811 = vmax.f32 %v753, 0.0
  %v812 = vmax.f32 %v755, 0.0
  %v813 = vmax.f32 %v758, 0.0
  %v814 = vmax.f32 %v760, 0.0
  %v815 = vmax.f32 %v763, 0.0
  %v816 = vmax.f32 %v765, 0.0
  %v817 = vmax.f32 %v768, 0.0
  %v818 = vmax.f32 %v770, 0.0
  %v819 = vmax.f32 %v773, 0.0
  %v820 = vmax.f32 %v775, 0.0
  %v821 = vmax.f32 %v778, 0.0
  %v822 = vmax.f32 %v780, 0.0
  %v823 = vmax.f32 %v783, 0.0
  %v824 = vmax.f32 %v785, 0.0
  %v825 = vmax.f32 %v788, 0.0
  %v826 = vmax.f32 %v790, 0.0
  %v827 = vmax.f32 %v793, 0.0
  %v828 = vmax.f32 %v795, 0.0
  %v829 = vsub.f32 %v443, %v797
  %v830 = vsub.f32 %v444, %v798
  %v831 = vsub.f32 %v445, %v799
  %v832 = vsub.f32 %v446, %v800
  %v833 = vsub.f32 %v447, %v801
  %v834 = vsub.f32 %v448, %v802
  %v835 = vsub.f32 %v449, %v803
  %v836 = vsub.f32 %v450, %v804
  %v837 = vsub.f32 %v451, %v805
  %v838 = vsub.f32 %v452, %v806
  %v839 = vsub.f32 %v453, %v807
  %v840 = vsub.f32 %v454, %v808
  %v841 = vsub.f32 %v455, %v809
  %v842 = vsub.f32 %v456, %v810
  %v843 = vsub.f32 %v457, %v811
  %v844 = vsub.f32 %v458, %v812
  %v845 = vsub.f32 %v459, %v813
  %v846 = vsub.f32 %v460, %v814
  %v847 = vsub.f32 %v461, %v815
  %v848 = vsub.f32 %v462, %v816
  %v849 = vsub.f32 %v463, %v817
  %v850 = vsub.f32 %v464, %v818
  %v851 = vsub.f32 %v465, %v819
  %v852 = vsub.f32 %v466, %v820
  %v853 = vsub.f32 %v467, %v821
  %v854 = vsub.f32 %v468, %v822
  %v855 = vsub.f32 %v469, %v823
  %v856 = vsub.f32 %v470, %v824
  %v857 = vsub.f32 %v471, %v825
  %v858 = vsub.f32 %v472, %v826
  %v859 = vsub.f32 %v473, %v827
  %v860 = vsub.f32 %v474, %v828
  %v861 = vld [vmem:[%s6] sm:$0x1]
  %v863 = vperm.slane %v861, 0
  %v865 = vmul.f32 %v829, %v863
  %v866 = vmul.f32 %v830, %v863
  %v867 = vmul.f32 %v831, %v863
  %v868 = vmul.f32 %v832, %v863
  %v869 = vmul.f32 %v833, %v863
  %v870 = vmul.f32 %v834, %v863
  %v871 = vmul.f32 %v835, %v863
  %v872 = vmul.f32 %v836, %v863
  %v873 = vmul.f32 %v837, %v863
  %v874 = vmul.f32 %v838, %v863
  %v875 = vmul.f32 %v839, %v863
  %v876 = vmul.f32 %v840, %v863
  %v877 = vmul.f32 %v841, %v863
  %v878 = vmul.f32 %v842, %v863
  %v879 = vmul.f32 %v843, %v863
  %v880 = vmul.f32 %v844, %v863
  %v881 = vmul.f32 %v845, %v863
  %v882 = vmul.f32 %v846, %v863
  %v883 = vmul.f32 %v847, %v863
  %v884 = vmul.f32 %v848, %v863
  %v885 = vmul.f32 %v849, %v863
  %v886 = vmul.f32 %v850, %v863
  %v887 = vmul.f32 %v851, %v863
  %v888 = vmul.f32 %v852, %v863
  %v889 = vmul.f32 %v853, %v863
  %v890 = vmul.f32 %v854, %v863
  %v891 = vmul.f32 %v855, %v863
  %v892 = vmul.f32 %v856, %v863
  %v893 = vmul.f32 %v857, %v863
  %v894 = vmul.f32 %v858, %v863
  %v895 = vmul.f32 %v859, %v863
  %v896 = vmul.f32 %v860, %v863
  %vm897 = vcmask 523264
  %v898 = vsel %vm897, %v865, 0.0
  %899 = vadd.xlane.f32.xlu0 %v898
  %v900 = vpop.xlane.xlu0 %899
  %v901 = vsel %vm897, %v866, 0.0
  %902 = vadd.xlane.f32.xlu0 %v901
  %v903 = vpop.xlane.xlu0 %902
  %v904 = vsel %vm897, %v867, 0.0
  %905 = vadd.xlane.f32.xlu0 %v904
  %v906 = vpop.xlane.xlu0 %905
  %v907 = vsel %vm897, %v868, 0.0
  %908 = vadd.xlane.f32.xlu0 %v907
  %v909 = vpop.xlane.xlu0 %908
  %v910 = vsel %vm897, %v869, 0.0
  %911 = vadd.xlane.f32.xlu0 %v910
  %v912 = vpop.xlane.xlu0 %911
  %v913 = vsel %vm897, %v870, 0.0
  %914 = vadd.xlane.f32.xlu0 %v913
  %v915 = vpop.xlane.xlu0 %914
  %v916 = vsel %vm897, %v871, 0.0
  %917 = vadd.xlane.f32.xlu0 %v916
  %v918 = vpop.xlane.xlu0 %917
  %v919 = vsel %vm897, %v872, 0.0
  %920 = vadd.xlane.f32.xlu0 %v919
  %v921 = vpop.xlane.xlu0 %920
  %v922 = vsel %vm897, %v873, 0.0
  %923 = vadd.xlane.f32.xlu0 %v922
  %v924 = vpop.xlane.xlu0 %923
  %v925 = vsel %vm897, %v874, 0.0
  %926 = vadd.xlane.f32.xlu0 %v925
  %v927 = vpop.xlane.xlu0 %926
  %v928 = vsel %vm897, %v875, 0.0
  %929 = vadd.xlane.f32.xlu0 %v928
  %v930 = vpop.xlane.xlu0 %929
  %v931 = vsel %vm897, %v876, 0.0
  %932 = vadd.xlane.f32.xlu0 %v931
  %v933 = vpop.xlane.xlu0 %932
  %v934 = vsel %vm897, %v877, 0.0
  %935 = vadd.xlane.f32.xlu0 %v934
  %v936 = vpop.xlane.xlu0 %935
  %v937 = vsel %vm897, %v878, 0.0
  %938 = vadd.xlane.f32.xlu0 %v937
  %v939 = vpop.xlane.xlu0 %938
  %v940 = vsel %vm897, %v879, 0.0
  %941 = vadd.xlane.f32.xlu0 %v940
  %v942 = vpop.xlane.xlu0 %941
  %v943 = vsel %vm897, %v880, 0.0
  %944 = vadd.xlane.f32.xlu0 %v943
  %v945 = vpop.xlane.xlu0 %944
  %v946 = vsel %vm897, %v881, 0.0
  %947 = vadd.xlane.f32.xlu0 %v946
  %v948 = vpop.xlane.xlu0 %947
  %v949 = vsel %vm897, %v882, 0.0
  %950 = vadd.xlane.f32.xlu0 %v949
  %v951 = vpop.xlane.xlu0 %950
  %v952 = vsel %vm897, %v883, 0.0
  %953 = vadd.xlane.f32.xlu0 %v952
  %v954 = vpop.xlane.xlu0 %953
  %v955 = vsel %vm897, %v884, 0.0
  %956 = vadd.xlane.f32.xlu0 %v955
  %v957 = vpop.xlane.xlu0 %956
  %v958 = vsel %vm897, %v885, 0.0
  %959 = vadd.xlane.f32.xlu0 %v958
  %v960 = vpop.xlane.xlu0 %959
  %v961 = vsel %vm897, %v886, 0.0
  %962 = vadd.xlane.f32.xlu0 %v961
  %v963 = vpop.xlane.xlu0 %962
  %v964 = vsel %vm897, %v887, 0.0
  %965 = vadd.xlane.f32.xlu0 %v964
  %v966 = vpop.xlane.xlu0 %965
  %v967 = vsel %vm897, %v888, 0.0
  %968 = vadd.xlane.f32.xlu0 %v967
  %v969 = vpop.xlane.xlu0 %968
  %v970 = vsel %vm897, %v889, 0.0
  %971 = vadd.xlane.f32.xlu0 %v970
  %v972 = vpop.xlane.xlu0 %971
  %v973 = vsel %vm897, %v890, 0.0
  %974 = vadd.xlane.f32.xlu0 %v973
  %v975 = vpop.xlane.xlu0 %974
  %v976 = vsel %vm897, %v891, 0.0
  %977 = vadd.xlane.f32.xlu0 %v976
  %v978 = vpop.xlane.xlu0 %977
  %v979 = vsel %vm897, %v892, 0.0
  %980 = vadd.xlane.f32.xlu0 %v979
  %v981 = vpop.xlane.xlu0 %980
  %v982 = vsel %vm897, %v893, 0.0
  %983 = vadd.xlane.f32.xlu0 %v982
  %v984 = vpop.xlane.xlu0 %983
  %v985 = vsel %vm897, %v894, 0.0
  %986 = vadd.xlane.f32.xlu0 %v985
  %v987 = vpop.xlane.xlu0 %986
  %v988 = vsel %vm897, %v895, 0.0
  %989 = vadd.xlane.f32.xlu0 %v988
  %v990 = vpop.xlane.xlu0 %989
  %v991 = vsel %vm897, %v896, 0.0
  %992 = vadd.xlane.f32.xlu0 %v991
  %v993 = vpop.xlane.xlu0 %992
  %v994 = vld [vmem:[#allocation2] sm:$0x1]
  %v996 = vperm.slane %v994, 0
  %v998 = vadd.f32 %v900, %v996
  %v999 = vadd.f32 %v903, %v996
  %v1000 = vadd.f32 %v906, %v996
  %v1001 = vadd.f32 %v909, %v996
  %v1002 = vadd.f32 %v912, %v996
  %v1003 = vadd.f32 %v915, %v996
  %v1004 = vadd.f32 %v918, %v996
  %v1005 = vadd.f32 %v921, %v996
  %v1006 = vadd.f32 %v924, %v996
  %v1007 = vadd.f32 %v927, %v996
  %v1008 = vadd.f32 %v930, %v996
  %v1009 = vadd.f32 %v933, %v996
  %v1010 = vadd.f32 %v936, %v996
  %v1011 = vadd.f32 %v939, %v996
  %v1012 = vadd.f32 %v942, %v996
  %v1013 = vadd.f32 %v945, %v996
  %v1014 = vadd.f32 %v948, %v996
  %v1015 = vadd.f32 %v951, %v996
  %v1016 = vadd.f32 %v954, %v996
  %v1017 = vadd.f32 %v957, %v996
  %v1018 = vadd.f32 %v960, %v996
  %v1019 = vadd.f32 %v963, %v996
  %v1020 = vadd.f32 %v966, %v996
  %v1021 = vadd.f32 %v969, %v996
  %v1022 = vadd.f32 %v972, %v996
  %v1023 = vadd.f32 %v975, %v996
  %v1024 = vadd.f32 %v978, %v996
  %v1025 = vadd.f32 %v981, %v996
  %v1026 = vadd.f32 %v984, %v996
  %v1027 = vadd.f32 %v987, %v996
  %v1028 = vadd.f32 %v990, %v996
  %v1029 = vadd.f32 %v993, %v996
  %vm1030 = vcmask 7168
  %1031 = vst.msk [vmem:[%s8] sm:$0xff] %vm1030, %v998
  %1032 = vst.msk [vmem:[%s8 + $0x8] sm:$0xff] %vm1030, %v999
  %1033 = vst.msk [vmem:[%s8 + $0x10] sm:$0xff] %vm1030, %v1000
  %1034 = vst.msk [vmem:[%s8 + $0x18] sm:$0xff] %vm1030, %v1001
  %1035 = vst.msk [vmem:[%s8 + $0x20] sm:$0xff] %vm1030, %v1002
  %1036 = vst.msk [vmem:[%s8 + $0x28] sm:$0xff] %vm1030, %v1003
  %1037 = vst.msk [vmem:[%s8 + $0x30] sm:$0xff] %vm1030, %v1004
  %1038 = vst.msk [vmem:[%s8 + $0x38] sm:$0xff] %vm1030, %v1005
  %1039 = vst.msk [vmem:[%s8 + $0x40] sm:$0xff] %vm1030, %v1006
  %1040 = vst.msk [vmem:[%s8 + $0x48] sm:$0xff] %vm1030, %v1007
  %1041 = vst.msk [vmem:[%s8 + $0x50] sm:$0xff] %vm1030, %v1008
  %1042 = vst.msk [vmem:[%s8 + $0x58] sm:$0xff] %vm1030, %v1009
  %1043 = vst.msk [vmem:[%s8 + $0x60] sm:$0xff] %vm1030, %v1010
  %1044 = vst.msk [vmem:[%s8 + $0x68] sm:$0xff] %vm1030, %v1011
  %1045 = vst.msk [vmem:[%s8 + $0x70] sm:$0xff] %vm1030, %v1012
  %1046 = vst.msk [vmem:[%s8 + $0x78] sm:$0xff] %vm1030, %v1013
  %1047 = vst.msk [vmem:[%s8 + $0x80] sm:$0xff] %vm1030, %v1014
  %1048 = vst.msk [vmem:[%s8 + $0x88] sm:$0xff] %vm1030, %v1015
  %1049 = vst.msk [vmem:[%s8 + $0x90] sm:$0xff] %vm1030, %v1016
  %1050 = vst.msk [vmem:[%s8 + $0x98] sm:$0xff] %vm1030, %v1017
  %1051 = vst.msk [vmem:[%s8 + $0xa0] sm:$0xff] %vm1030, %v1018
  %1052 = vst.msk [vmem:[%s8 + $0xa8] sm:$0xff] %vm1030, %v1019
  %1053 = vst.msk [vmem:[%s8 + $0xb0] sm:$0xff] %vm1030, %v1020
  %1054 = vst.msk [vmem:[%s8 + $0xb8] sm:$0xff] %vm1030, %v1021
  %1055 = vst.msk [vmem:[%s8 + $0xc0] sm:$0xff] %vm1030, %v1022
  %1056 = vst.msk [vmem:[%s8 + $0xc8] sm:$0xff] %vm1030, %v1023
  %1057 = vst.msk [vmem:[%s8 + $0xd0] sm:$0xff] %vm1030, %v1024
  %1058 = vst.msk [vmem:[%s8 + $0xd8] sm:$0xff] %vm1030, %v1025
  %1059 = vst.msk [vmem:[%s8 + $0xe0] sm:$0xff] %vm1030, %v1026
  %1060 = vst.msk [vmem:[%s8 + $0xe8] sm:$0xff] %vm1030, %v1027
  %1061 = vst.msk [vmem:[%s8 + $0xf0] sm:$0xff] %vm1030, %v1028
  %1062 = vst.msk [vmem:[%s8 + $0xf8] sm:$0xff] %vm1030, %v1029
  // Predicated region
  $region34: #{tpu_custom_call.1} parent=0 // pred_check
    _
  $region35: #{tpu_custom_call.1} parent=0 // pred_check_branch
    %1064 = sbr.rel (0) target = $region37
  $region36: #{tpu_custom_call.1} parent=0 // pred_region
    _
  $region37: #{tpu_custom_call.1} parent=0 // pred_fallthru
    _
  // Predicated region
  $region38: #{tpu_custom_call.1} parent=0 // pred_check
    _
  $region39: #{tpu_custom_call.1} parent=0 // pred_check_branch
    %1066 = sbr.rel (0) target = $region41
  $region40: #{tpu_custom_call.1} parent=0 // pred_region
    _
  $region41: #{tpu_custom_call.1} parent=0 // pred_fallthru
    _

</llo_original>
